<compile_context>
chip_gen: v5e
topology: v5e:2x2
jax: 0.10.0
libtpu: 0.0.40
codegen_flags: <defaults>
</compile_context>

<pallas_src>
import functools

import jax
import jax.numpy as jnp
import numpy as np
from jax.experimental import pallas as pl
from jax.experimental.pallas import tpu as pltpu


_SCALES = ("fire8", "fire9", "fire10", "conv12_2")
_N_BOXES = {"fire8": 1, "fire9": 1, "fire10": 1, "conv12_2": 1}
_IN_CH = {"fire8": 16, "fire9": 16, "fire10": 16, "conv12_2": 8}

_K_MAX = 9 * max(_IN_CH.values())   # 144: common (zero-padded) contraction depth


# --------------------------------------------------------------------------
# Pallas kernel: one scale of the fused loc+class conv heads (batch in lanes)
# --------------------------------------------------------------------------

def _fused_heads_kernel(x_ref, w_ref, b_ref, o_ref):
    """Fused prediction-head conv as a single MXU matmul.

    x_ref: (K, P)          bf16 im2col patches, K = 9*Cin zero-padded to 144,
                           P = B*H*W zero-padded to a multiple of 128 (lane-dense).
    w_ref: (Cout_pad, K)   bf16 fused (loc || class) weights, zero-padded to a
                           multiple of 8 rows, already transposed.
    b_ref: (Cout_pad, 1)   f32 fused bias (zero-padded rows).
    o_ref: (Cout_pad, P)   f32 output, (batch, spatial) flattened on lanes.
    """
    acc = jnp.dot(w_ref[...], x_ref[...],
                  preferred_element_type=jnp.float32)      # (Cout_pad, P)
    o_ref[...] = (acc + b_ref[...]).astype(o_ref.dtype)


# --------------------------------------------------------------------------
# Wrapper helpers
# --------------------------------------------------------------------------

def _im2col_nchw(x_nchw, k_pad, p_pad):
    """(B, Cin, H, W) -> (k_pad, p_pad) bf16 patches for a 3x3/pad=1 conv.

    Row layout is tap-major, channel-minor: row = (dh*3 + dw)*Cin + c, which
    matches w.reshape(9*Cin, Cout) of an HWIO (3, 3, Cin, Cout) weight.
    Lane layout is batch-major, spatial-minor: col = b*(H*W) + h*W + w.
    """
    B, Cin, H, W = x_nchw.shape
    x = x_nchw.astype(jnp.bfloat16)                         # cast before expansion
    xp = jnp.pad(x, ((0, 0), (0, 0), (1, 1), (1, 1)))
    taps = []
    for dh in range(3):
        for dw in range(3):
            taps.append(xp[:, :, dh:dh + H, dw:dw + W].reshape(B, Cin, H * W))
    patches = jnp.concatenate(taps, axis=1)                 # (B, 9*Cin, H*W)
    patches = jnp.transpose(patches, (1, 0, 2)).reshape(9 * Cin, B * H * W)
    patches = jnp.pad(patches,
                      ((0, k_pad - 9 * Cin), (0, p_pad - B * H * W)))
    return patches                                          # (k_pad, p_pad) bf16


def fuse_prediction_conv_params(params, n_classes):
    """Precompute fused (loc || class) weights/biases, once per model.

    Returns:
      w_all: (n_scales, Cout_pad, 144) bf16, weights transposed to (Cout, K),
             Cout zero-padded to a multiple of 8.
      b_all: (n_scales, Cout_pad, 1)   f32.
    """
    cout_f = 4 + n_classes
    cout_pad = max(8, -(-cout_f // 8) * 8)
    w_list, b_list = [], []
    for name in _SCALES:
        cin = _IN_CH[name]
        w_loc, b_loc = params[f"loc_{name}"]
        w_cl, b_cl = params[f"cl_{name}"]
        w = jnp.concatenate([w_loc.reshape(9 * cin, -1),
                             w_cl.reshape(9 * cin, -1)], axis=1)    # (9Cin, 4+C)
        wt = jnp.pad(w.T, ((0, cout_pad - cout_f),
                           (0, _K_MAX - 9 * cin)))                   # (Cout_pad, 144)
        b = jnp.pad(jnp.concatenate([b_loc, b_cl]),
                    (0, cout_pad - cout_f))[:, None]                 # (Cout_pad, 1)
        w_list.append(wt.astype(jnp.bfloat16))
        b_list.append(b.astype(jnp.float32))
    return jnp.stack(w_list), jnp.stack(b_list)


# --------------------------------------------------------------------------
# PredictionConvolutions: parameters + forward
# --------------------------------------------------------------------------

def init_prediction_conv_params(key, n_classes):
    """Deterministic xavier-uniform conv weights, zero bias (BN folded to id)."""
    params = {}
    for name in _SCALES:
        cin = _IN_CH[name]
        for head, cout in (("loc", _N_BOXES[name] * 4),
                           ("cl", _N_BOXES[name] * n_classes)):
            key, sub = jax.random.split(key)
            fan_in = cin * 9
            fan_out = cout * 9
            limit = (6.0 / (fan_in + fan_out)) ** 0.5
            w = jax.random.uniform(sub, (3, 3, cin, cout), jnp.float32,
                                   -limit, limit)
            b = jnp.zeros((cout,), jnp.float32)
            params[f"{head}_{name}"] = (w, b)
    return params


@functools.partial(jax.jit, static_argnames=("n_classes",))
def prediction_convolutions(w_all, b_all, fire4_feats, fire8_feats, fire9_feats,
                            fire10_feats, conv12_2_feats, *, n_classes):
    """Forward pass. All *_feats inputs are NCHW (PyTorch convention).

    fire4_feats is only used for the batch size, matching the original module.
    """
    batch_size = fire4_feats.shape[0]
    feats = {"fire8": fire8_feats, "fire9": fire9_feats,
             "fire10": fire10_feats, "conv12_2": conv12_2_feats}

    cout_pad = w_all.shape[1]
    spatial = {n: feats[n].shape[2] * feats[n].shape[3] for n in _SCALES}
    p_max = batch_size * max(spatial.values())
    p_pad = max(128, -(-p_max // 128) * 128)     # lane-dense multiple of 128

    # Per-scale (K, B*P) im2col patches, batch folded into lanes.
    x_all = jnp.stack([_im2col_nchw(feats[n], _K_MAX, p_pad) for n in _SCALES])

    n_scales = len(_SCALES)
    out = pl.pallas_call(
        _fused_heads_kernel,
        out_shape=jax.ShapeDtypeStruct((n_scales, cout_pad, p_pad), jnp.float32),
        grid=(n_scales,),
        in_specs=[
            pl.BlockSpec((None, _K_MAX, p_pad), lambda s: (s, 0, 0)),
            pl.BlockSpec((None, cout_pad, _K_MAX), lambda s: (s, 0, 0)),
            pl.BlockSpec((None, cout_pad, 1), lambda s: (s, 0, 0)),
        ],
        out_specs=pl.BlockSpec((None, cout_pad, p_pad), lambda s: (s, 0, 0)),
        compiler_params=pltpu.CompilerParams(
            dimension_semantics=("parallel",)),
    )(x_all, w_all, b_all)

    # Un-pad, reorder to (B, priors, channels) and split the fused heads.
    # NOTE: padded lane columns carry bias garbage; slice immediately.
    locs, classes = [], []
    for si, name in enumerate(_SCALES):
        p = spatial[name]
        head = out[si, :, :batch_size * p]                  # (Cout_pad, B*P)
        head = head.reshape(cout_pad, batch_size, p)
        head = jnp.transpose(head, (1, 2, 0))               # (B, P, Cout_pad)
        locs.append(head[:, :, :4])
        classes.append(head[:, :, 4:4 + n_classes])

    return (jnp.concatenate(locs, axis=1),
            jnp.concatenate(classes, axis=1))


# --------------------------------------------------------------------------
# Pure-JAX reference (bf16 operands, f32 accumulation -- same precision path)
# --------------------------------------------------------------------------

def _reference(params, feats_nchw, n_classes):
    locs, classes = [], []
    for name in _SCALES:
        x = feats_nchw[name].astype(jnp.bfloat16)
        outs = {}
        for head in ("loc", "cl"):
            w, b = params[f"{head}_{name}"]
            y = jax.lax.conv_general_dilated(
                x, w.astype(jnp.bfloat16),
                window_strides=(1, 1), padding="SAME",
                dimension_numbers=("NCHW", "HWIO", "NHWC"),
                preferred_element_type=jnp.float32)
            y = y + b[None, None, None, :]
            outs[head] = y.reshape(y.shape[0], -1, y.shape[-1])
        locs.append(outs["loc"])
        classes.append(outs["cl"])
    return jnp.concatenate(locs, 1), jnp.concatenate(classes, 1)


if __name__ == "__main__":
    n_classes = 3
    B = 2
    key = jax.random.PRNGKey(0)
    key, k0, k1, k2, k3, k4, kp = jax.random.split(key, 7)

    # NCHW inputs, small shapes consistent with the module's channel counts.
    fire4_feats = jax.random.normal(k0, (B, 16, 16, 16), jnp.float32)
    fire8_feats = jax.random.normal(k1, (B, 16, 16, 16), jnp.float32)
    fire9_feats = jax.random.normal(k2, (B, 16, 8, 8), jnp.float32)
    fire10_feats = jax.random.normal(k3, (B, 16, 4, 4), jnp.float32)
    conv12_2_feats = jax.random.normal(k4, (B, 8, 4, 4), jnp.float32)

    params = init_prediction_conv_params(kp, n_classes)

    # Constant per-model work, hoisted out of the jitted forward.
    w_all, b_all = fuse_prediction_conv_params(params, n_classes)

    locs, class_scores = prediction_convolutions(
        w_all, b_all, fire4_feats, fire8_feats, fire9_feats, fire10_feats,
        conv12_2_feats, n_classes=n_classes)
    jax.block_until_ready((locs, class_scores))

    n_priors = 16 * 16 + 8 * 8 + 4 * 4 + 4 * 4   # = 352
    assert locs.shape == (B, n_priors, 4), locs.shape
    assert class_scores.shape == (B, n_priors, n_classes), class_scores.shape

    ref_locs, ref_cls = _reference(
        params,
        {"fire8": fire8_feats, "fire9": fire9_feats,
         "fire10": fire10_feats, "conv12_2": conv12_2_feats},
        n_classes)
    np.testing.assert_allclose(np.asarray(locs), np.asarray(ref_locs),
                               atol=1e-2, rtol=1e-2)
    np.testing.assert_allclose(np.asarray(class_scores), np.asarray(ref_cls),
                               atol=1e-2, rtol=1e-2)
    print("KERNEL_OK")
</pallas_src>

<mosaic_0001>
module attributes {stable_mosaic.version = 11 : i64} {
  func.func @_fused_heads_kernel(%arg0: i32, %arg1: memref<1x144x512xbf16, #tpu.memory_space<vmem>>, %arg2: memref<1x8x144xbf16, #tpu.memory_space<vmem>>, %arg3: memref<1x8x1xf32, #tpu.memory_space<vmem>>, %arg4: memref<1x8x512xf32, #tpu.memory_space<vmem>>) attributes {dimension_semantics = [#tpu.dimension_semantics<parallel>], iteration_bounds = array<i64: 4>, scalar_prefetch = 0 : i64, scratch_operands = 0 : i64, tpu.core_type = #tpu.core_type<tc>, window_params = [{transform_indices = @transform_0, window_bounds = array<i64: 1, 144, 512>}, {transform_indices = @transform_1, window_bounds = array<i64: 1, 8, 144>}, {transform_indices = @transform_2, window_bounds = array<i64: 1, 8, 1>}, {transform_indices = @transform_3, window_bounds = array<i64: 1, 8, 512>}]} {
    %c0 = arith.constant 0 : index
    %c0_0 = arith.constant 0 : index
    %c0_1 = arith.constant 0 : index
    %0 = vector.load %arg2[%c0, %c0_0, %c0_1] : memref<1x8x144xbf16, #tpu.memory_space<vmem>>, vector<1x8x144xbf16>
    %1 = vector.shape_cast %0 : vector<1x8x144xbf16> to vector<8x144xbf16>
    %c0_2 = arith.constant 0 : index
    %c0_3 = arith.constant 0 : index
    %c0_4 = arith.constant 0 : index
    %2 = vector.load %arg1[%c0_2, %c0_3, %c0_4] : memref<1x144x512xbf16, #tpu.memory_space<vmem>>, vector<1x144x512xbf16>
    %3 = vector.shape_cast %2 : vector<1x144x512xbf16> to vector<144x512xbf16>
    %cst = arith.constant dense<0.000000e+00> : vector<8x512xf32>
    %4 = tpu.matmul %1, %3, %cst {dimension_numbers = #tpu.dot_dimension_numbers<[1], [0], [0], [1], [0, 0, 1, 1], [], []>} : vector<8x144xbf16>, vector<144x512xbf16>, vector<8x512xf32> -> vector<8x512xf32>
    %c0_5 = arith.constant 0 : index
    %c0_6 = arith.constant 0 : index
    %c0_7 = arith.constant 0 : index
    %5 = vector.load %arg3[%c0_5, %c0_6, %c0_7] : memref<1x8x1xf32, #tpu.memory_space<vmem>>, vector<1x8x1xf32>
    %6 = vector.shape_cast %5 : vector<1x8x1xf32> to vector<8x1xf32>
    %7 = vector.broadcast %6 : vector<8x1xf32> to vector<8x512xf32>
    %8 = arith.addf %4, %7 : vector<8x512xf32>
    %c0_8 = arith.constant 0 : index
    %c0_9 = arith.constant 0 : index
    %c0_10 = arith.constant 0 : index
    %9 = vector.load %arg4[%c0_8, %c0_9, %c0_10] : memref<1x8x512xf32, #tpu.memory_space<vmem>>, vector<1x8x512xf32>
    %10 = vector.shape_cast %9 : vector<1x8x512xf32> to vector<8x512xf32>
    %11 = vector.shape_cast %8 : vector<8x512xf32> to vector<1x8x512xf32>
    tpu.vector_store %arg4[%c0_8, %c0_9, %c0_10], %11 {strides = array<i32>} : memref<1x8x512xf32, #tpu.memory_space<vmem>>, vector<1x8x512xf32>,
    return
  }
  func.func @transform_0(%arg0: i32) -> (i32, i32, i32) {
    %c0_i32 = arith.constant 0 : i32
    %c0_i32_0 = arith.constant 0 : i32
    %c0_i32_1 = arith.constant 0 : i32
    return %arg0, %c0_i32, %c0_i32_0 : i32, i32, i32
  }
  func.func @transform_1(%arg0: i32) -> (i32, i32, i32) {
    %c0_i32 = arith.constant 0 : i32
    %c0_i32_0 = arith.constant 0 : i32
    %c0_i32_1 = arith.constant 0 : i32
    return %arg0, %c0_i32, %c0_i32_0 : i32, i32, i32
  }
  func.func @transform_2(%arg0: i32) -> (i32, i32, i32) {
    %c0_i32 = arith.constant 0 : i32
    %c0_i32_0 = arith.constant 0 : i32
    %c0_i32_1 = arith.constant 0 : i32
    return %arg0, %c0_i32, %c0_i32_0 : i32, i32, i32
  }
  func.func @transform_3(%arg0: i32) -> (i32, i32, i32) {
    %c0_i32 = arith.constant 0 : i32
    %c0_i32_0 = arith.constant 0 : i32
    %c0_i32_1 = arith.constant 0 : i32
    return %arg0, %c0_i32, %c0_i32_0 : i32, i32, i32
  }
}

</mosaic_0001>

<llo_original>
// kernel: squeeze.6
$region0: #{squeeze.6}
  %s0 = inlined_call_operand.vmem [shape: f32[1,8,32], index: 0, kind: input, shape index: {}]
  %s1 = inlined_call_operand.vmem [shape: f32[8,2,16], index: 1, kind: output, shape index: {}]
  $region1: #{squeeze.6} parent=0
    #allocation0 [shape = 'u8[32768]{0}', space=vmem, size = 0x8000, scoped, tag = 'scoped mem for output reshape']
    %v2 = vld [vmem:[%s0] sm:$0xff]
    %vm3 = vcmask 130048
    %4 = vst.msk [vmem:[#allocation0] ss:$8 sm:$0xf] %vm3, %v2
    %5 = vst.msk [vmem:[#allocation0] ss:$8 sm:$0xf0] %vm3, %v2
    %v6 = vld [vmem:[%s0] sm:$0xff]
    %7 = vrot.lane.b32.xlu0 %v6, 112
    %v8 = vpop.permute.xlu0 %7
    %vm9 = vcmask 130048
    %s10 = scalar_lea.vmem [#allocation0], 1
    %11 = vst.msk [vmem:[%s10] ss:$8 sm:$0xf] %vm9, %v8
    %s12 = scalar_lea.vmem [#allocation0], 1
    %13 = vst.msk [vmem:[%s12] ss:$8 sm:$0xf0] %vm9, %v8
    %s15 = ssub.s32 4, 1
    %v16 = vld [vmem:[#allocation0] sm:%s15]
    %s18 = ssub.s32 4, 1
    %19 = vst [vmem:[%s1] sm:%s18] %v16
    %s20 = scalar_lea.vmem [#allocation0], 8
    %v21 = vld [vmem:[%s20] sm:%s15]
    %s23 = ssub.s32 4, 1
    %s24 = scalar_lea.vmem %s1, 2
    %25 = vst [vmem:[%s24] sm:%s23] %v21
    %s26 = scalar_lea.vmem [#allocation0], 16
    %v27 = vld [vmem:[%s26] sm:%s15]
    %s29 = ssub.s32 4, 1
    %s30 = scalar_lea.vmem %s1, 4
    %31 = vst [vmem:[%s30] sm:%s29] %v27
    %s32 = scalar_lea.vmem [#allocation0], 24
    %v33 = vld [vmem:[%s32] sm:%s15]
    %s35 = ssub.s32 4, 1
    %s36 = scalar_lea.vmem %s1, 6
    %37 = vst [vmem:[%s36] sm:%s35] %v33
    %s38 = scalar_lea.vmem [#allocation0], 32
    %v39 = vld [vmem:[%s38] sm:%s15]
    %s41 = ssub.s32 4, 1
    %s42 = scalar_lea.vmem %s1, 8
    %43 = vst [vmem:[%s42] sm:%s41] %v39
    %s44 = scalar_lea.vmem [#allocation0], 40
    %v45 = vld [vmem:[%s44] sm:%s15]
    %s47 = ssub.s32 4, 1
    %s48 = scalar_lea.vmem %s1, 10
    %49 = vst [vmem:[%s48] sm:%s47] %v45
    %s50 = scalar_lea.vmem [#allocation0], 48
    %v51 = vld [vmem:[%s50] sm:%s15]
    %s53 = ssub.s32 4, 1
    %s54 = scalar_lea.vmem %s1, 12
    %55 = vst [vmem:[%s54] sm:%s53] %v51
    %s56 = scalar_lea.vmem [#allocation0], 56
    %v57 = vld [vmem:[%s56] sm:%s15]
    %s59 = ssub.s32 4, 1
    %s60 = scalar_lea.vmem %s1, 14
    %61 = vst [vmem:[%s60] sm:%s59] %v57

// kernel: squeeze.5
$region0: #{squeeze.5}
  %s0 = inlined_call_operand.vmem [shape: f32[1,8,128], index: 0, kind: input, shape index: {}]
  %s1 = inlined_call_operand.vmem [shape: f32[8,2,64], index: 1, kind: output, shape index: {}]
  $region1: #{squeeze.5} parent=0
    #allocation0 [shape = 'u8[32768]{0}', space=vmem, size = 0x8000, scoped, tag = 'scoped mem for output reshape']
    %v2 = vld [vmem:[%s0] sm:$0xff]
    %vm3 = vcmask 523264
    %4 = vst.msk [vmem:[#allocation0] ss:$8 sm:$0xf] %vm3, %v2
    %5 = vst.msk [vmem:[#allocation0] ss:$8 sm:$0xf0] %vm3, %v2
    %v6 = vld [vmem:[%s0] sm:$0xff]
    %7 = vrot.lane.b32.xlu0 %v6, 64
    %v8 = vpop.permute.xlu0 %7
    %vm9 = vcmask 523264
    %s10 = scalar_lea.vmem [#allocation0], 1
    %11 = vst.msk [vmem:[%s10] ss:$8 sm:$0xf] %vm9, %v8
    %s12 = scalar_lea.vmem [#allocation0], 1
    %13 = vst.msk [vmem:[%s12] ss:$8 sm:$0xf0] %vm9, %v8
    %s15 = ssub.s32 4, 1
    %v16 = vld [vmem:[#allocation0] sm:%s15]
    %s18 = ssub.s32 4, 1
    %19 = vst [vmem:[%s1] sm:%s18] %v16
    %s20 = scalar_lea.vmem [#allocation0], 8
    %v21 = vld [vmem:[%s20] sm:%s15]
    %s23 = ssub.s32 4, 1
    %s24 = scalar_lea.vmem %s1, 2
    %25 = vst [vmem:[%s24] sm:%s23] %v21
    %s26 = scalar_lea.vmem [#allocation0], 16
    %v27 = vld [vmem:[%s26] sm:%s15]
    %s29 = ssub.s32 4, 1
    %s30 = scalar_lea.vmem %s1, 4
    %31 = vst [vmem:[%s30] sm:%s29] %v27
    %s32 = scalar_lea.vmem [#allocation0], 24
    %v33 = vld [vmem:[%s32] sm:%s15]
    %s35 = ssub.s32 4, 1
    %s36 = scalar_lea.vmem %s1, 6
    %37 = vst [vmem:[%s36] sm:%s35] %v33
    %s38 = scalar_lea.vmem [#allocation0], 32
    %v39 = vld [vmem:[%s38] sm:%s15]
    %s41 = ssub.s32 4, 1
    %s42 = scalar_lea.vmem %s1, 8
    %43 = vst [vmem:[%s42] sm:%s41] %v39
    %s44 = scalar_lea.vmem [#allocation0], 40
    %v45 = vld [vmem:[%s44] sm:%s15]
    %s47 = ssub.s32 4, 1
    %s48 = scalar_lea.vmem %s1, 10
    %49 = vst [vmem:[%s48] sm:%s47] %v45
    %s50 = scalar_lea.vmem [#allocation0], 48
    %v51 = vld [vmem:[%s50] sm:%s15]
    %s53 = ssub.s32 4, 1
    %s54 = scalar_lea.vmem %s1, 12
    %55 = vst [vmem:[%s54] sm:%s53] %v51
    %s56 = scalar_lea.vmem [#allocation0], 56
    %v57 = vld [vmem:[%s56] sm:%s15]
    %s59 = ssub.s32 4, 1
    %s60 = scalar_lea.vmem %s1, 14
    %61 = vst [vmem:[%s60] sm:%s59] %v57

// kernel: prediction_convolutions.1
$region0: #{prediction_convolutions.1}
  #allocation0 [shape = 'u32[]', space=smem, size = 0x4, offset = 0x4, fixed_abs, tag = 'smem constant byte address 0x4 - core index']
  #allocation1 [shape = 'u32[72,128]{1,0:T(1,128)}', space=vmem, size = 0x9000, scoped, tag = 'internal scratch']
  %s0 = inlined_call_operand.vmem [shape: bf16[4,144,512], index: 0, kind: input, shape index: {}]
  %s1 = inlined_call_operand.vmem [shape: bf16[4,8,144], index: 1, kind: input, shape index: {}]
  %s2 = inlined_call_operand.vmem [shape: f32[4,8,1], index: 2, kind: input, shape index: {}]
  %s3 = inlined_call_operand.vmem [shape: f32[4,8,512], index: 3, kind: output, shape index: {}]
  %s4 = sld [smem:[#allocation0]]
  $region45: #{prediction_convolutions.1} parent=0
    _
  %s6 = ssub.s32 1, %s4
  %s7 = scalar_select 0, %s6, %s4
  loop: start=0, step=1, limit=6
  $region2: #{prediction_convolutions.1} parent=0 // loop_pre_header
    _
  $region3: #{prediction_convolutions.1} parent=0 // loop_header
    %s9 = sphi 0, %s13
    %p10 = scmp.ge.s32.totalorder %s9, 6
    %s19 = sphi 0, %s21
    %s22 = sphi 0, %s19
    %s23 = sphi 0, %s22
    %s39 = sphi 0, %s23
    %s45 = sphi 0, %s47
    %s48 = sphi 0, %s45
    %s49 = sphi 0, %s48
    %s65 = sphi 0, %s49
    %s71 = sphi 0, %s73
    %s74 = sphi 0, %s71
    %s75 = sphi 0, %s74
    %s91 = sphi 0, %s75
    %s97 = sphi 0, %s99
    %s100 = sphi 0, %s97
    %s101 = sphi 0, %s100
    %s117 = sphi 0, %s101
  $region4: #{prediction_convolutions.1} parent=0 // loop_header_branch
    %12 = sbr.rel (%p10) target = $region8
  $region5: #{prediction_convolutions.1} parent=0 // loop_body
    %s14 = ssub.s32 %s9, 1
    %s15 = ssub.s32 %s9, 2
    %s16 = sadd.s32 %s9, 1
    %s17 = ssub.s32 %s9, %s16
    %p18 = scmp.eq.s32.totalorder %s17, 0
    %s20 = sadd.s32 %s19, 1
    %s21 = scalar_select %p18, %s19, %s20
    %p24 = pneg %p18
    %p25 = scmp.eq.s32.totalorder %s9, 3
    %p26 = por %p24, %p25
    %p27 = scmp.ne.s32.totalorder %s19, %s22
    %p28 = scmp.eq.s32.totalorder %s9, 0
    %p29 = por %p27, %p28
    %p30 = scmp.ne.s32.totalorder %s19, %s22
    %p31 = scmp.eq.s32.totalorder %s14, 3
    %p32 = por %p30, %p31
    %p33 = scmp.ne.s32.totalorder %s22, %s23
    %p34 = scmp.eq.s32.totalorder %s14, 0
    %p35 = por %p33, %p34
    %p36 = scmp.ne.s32.totalorder %s22, %s23
    %p37 = scmp.eq.s32.totalorder %s15, 3
    %p38 = por %p36, %p37
    %p40 = scmp.ne.s32.totalorder %s23, %s39
    %p41 = scmp.eq.s32.totalorder %s15, 0
    %p42 = por %p40, %p41
    %s43 = ssub.s32 %s9, %s16
    %p44 = scmp.eq.s32.totalorder %s43, 0
    %s46 = sadd.s32 %s45, 1
    %s47 = scalar_select %p44, %s45, %s46
    %p50 = pneg %p44
    %p51 = scmp.eq.s32.totalorder %s9, 3
    %p52 = por %p50, %p51
    %p53 = scmp.ne.s32.totalorder %s45, %s48
    %p54 = scmp.eq.s32.totalorder %s9, 0
    %p55 = por %p53, %p54
    %p56 = scmp.ne.s32.totalorder %s45, %s48
    %p57 = scmp.eq.s32.totalorder %s14, 3
    %p58 = por %p56, %p57
    %p59 = scmp.ne.s32.totalorder %s48, %s49
    %p60 = scmp.eq.s32.totalorder %s14, 0
    %p61 = por %p59, %p60
    %p62 = scmp.ne.s32.totalorder %s48, %s49
    %p63 = scmp.eq.s32.totalorder %s15, 3
    %p64 = por %p62, %p63
    %p66 = scmp.ne.s32.totalorder %s49, %s65
    %p67 = scmp.eq.s32.totalorder %s15, 0
    %p68 = por %p66, %p67
    %s69 = ssub.s32 %s9, %s16
    %p70 = scmp.eq.s32.totalorder %s69, 0
    %s72 = sadd.s32 %s71, 1
    %s73 = scalar_select %p70, %s71, %s72
    %p76 = pneg %p70
    %p77 = scmp.eq.s32.totalorder %s9, 3
    %p78 = por %p76, %p77
    %p79 = scmp.ne.s32.totalorder %s71, %s74
    %p80 = scmp.eq.s32.totalorder %s9, 0
    %p81 = por %p79, %p80
    %p82 = scmp.ne.s32.totalorder %s71, %s74
    %p83 = scmp.eq.s32.totalorder %s14, 3
    %p84 = por %p82, %p83
    %p85 = scmp.ne.s32.totalorder %s74, %s75
    %p86 = scmp.eq.s32.totalorder %s14, 0
    %p87 = por %p85, %p86
    %p88 = scmp.ne.s32.totalorder %s74, %s75
    %p89 = scmp.eq.s32.totalorder %s15, 3
    %p90 = por %p88, %p89
    %p92 = scmp.ne.s32.totalorder %s75, %s91
    %p93 = scmp.eq.s32.totalorder %s15, 0
    %p94 = por %p92, %p93
    %s95 = ssub.s32 %s9, %s16
    %p96 = scmp.eq.s32.totalorder %s95, 0
    %s98 = sadd.s32 %s97, 1
    %s99 = scalar_select %p96, %s97, %s98
    %p102 = pneg %p96
    %p103 = scmp.eq.s32.totalorder %s9, 3
    %p104 = por %p102, %p103
    %p105 = scmp.ne.s32.totalorder %s97, %s100
    %p106 = scmp.eq.s32.totalorder %s9, 0
    %p107 = por %p105, %p106
    %p108 = scmp.ne.s32.totalorder %s97, %s100
    %p109 = scmp.eq.s32.totalorder %s14, 3
    %p110 = por %p108, %p109
    %p111 = scmp.ne.s32.totalorder %s100, %s101
    %p112 = scmp.eq.s32.totalorder %s14, 0
    %p113 = por %p111, %p112
    %p114 = scmp.ne.s32.totalorder %s100, %s101
    %p115 = scmp.eq.s32.totalorder %s15, 3
    %p116 = por %p114, %p115
    %p118 = scmp.ne.s32.totalorder %s101, %s117
    %p119 = scmp.eq.s32.totalorder %s15, 0
    %p120 = por %p118, %p119
    %p121 = scmp.le.s32.totalorder 1, %s9
    %p122 = scmp.lt.s32.totalorder %s9, 5
    %p123 = pnand %p121, %p122
    %p124 = pneg %p123
    // Predicated region
    $region9: #{prediction_convolutions.1} parent=5 // pred_check
      _
    $region10: #{prediction_convolutions.1} parent=5 // pred_check_branch
      %126 = sbr.rel (%p123) target = $region12
    $region11: #{prediction_convolutions.1} parent=5 // pred_region
      %s127 = ssub.s32 %s9, 1
    $region12: #{prediction_convolutions.1} parent=5 // pred_fallthru
      _
    %p128 = scmp.lt.s32.totalorder %s9, 4
    // Predicated region
    $region13: #{prediction_convolutions.1} parent=5 // pred_check
      %p129 = pneg %p128
    $region14: #{prediction_convolutions.1} parent=5 // pred_check_branch
      %131 = sbr.rel (%p129) target = $region16
    $region15: #{prediction_convolutions.1} parent=5 // pred_region
      // Predicated region
      $region17: #{prediction_convolutions.1} parent=15 // pred_check
        %p132 = pneg %p29
      $region18: #{prediction_convolutions.1} parent=15 // pred_check_branch
        %134 = sbr.rel (%p132) target = $region20
      $region19: #{prediction_convolutions.1} parent=15 // pred_region
        %p135 = scmp.lt.s32.totalorder %s9, 3
        %s136 = scalar_select %p135, %s9, 3
        %s137 = smul.addr %s136, 72
        %s138 = smul.addr %s137, 4
        %s139 = scalar_lea.vmem %s0, %s138
      $region20: #{prediction_convolutions.1} parent=15 // pred_fallthru
        _
      // Predicated region
      $region21: #{prediction_convolutions.1} parent=15 // pred_check
        %p140 = pneg %p55
      $region22: #{prediction_convolutions.1} parent=15 // pred_check_branch
        %142 = sbr.rel (%p140) target = $region24
      $region23: #{prediction_convolutions.1} parent=15 // pred_region
        %p143 = scmp.lt.s32.totalorder %s9, 3
        %s144 = scalar_select %p143, %s9, 3
        %s145 = smul.addr %s144, 2
        %s146 = smul.addr %s145, 4
        %s147 = scalar_lea.vmem %s1, %s146
      $region24: #{prediction_convolutions.1} parent=15 // pred_fallthru
        _
      // Predicated region
      $region25: #{prediction_convolutions.1} parent=15 // pred_check
        %p148 = pneg %p81
      $region26: #{prediction_convolutions.1} parent=15 // pred_check_branch
        %150 = sbr.rel (%p148) target = $region28
      $region27: #{prediction_convolutions.1} parent=15 // pred_region
        %p151 = scmp.lt.s32.totalorder %s9, 3
        %s152 = scalar_select %p151, %s9, 3
        %s153 = smul.addr %s152, 8
        %s154 = scalar_lea.vmem %s2, %s153
      $region28: #{prediction_convolutions.1} parent=15 // pred_fallthru
        _
    $region16: #{prediction_convolutions.1} parent=5 // pred_fallthru
      _
    %p155 = scmp.le.s32.totalorder 1, %s9
    %p156 = scmp.lt.s32.totalorder %s9, 5
    %p157 = pnand %p155, %p156
    %p158 = pneg %p157
    // Predicated region
    $region29: #{prediction_convolutions.1} parent=5 // pred_check
      _
    $region30: #{prediction_convolutions.1} parent=5 // pred_check_branch
      %160 = sbr.rel (%p157) target = $region32
    $region31: #{prediction_convolutions.1} parent=5 // pred_region
      %s161 = ssub.s32 %s9, 1
      %p162 = scmp.lt.s32.totalorder %s14, 3
      %s163 = scalar_select %p162, %s14, 3
      %s164 = smul.addr %s163, 72
      %s165 = smul.addr %s164, 4
      %s166 = scalar_lea.vmem %s0, %s165
      %p167 = pneg %p35
      %p168 = pneg %p32
      %p169 = scmp.lt.s32.totalorder %s14, 3
      %s170 = scalar_select %p169, %s14, 3
      %s171 = smul.addr %s170, 2
      %s172 = smul.addr %s171, 4
      %s173 = scalar_lea.vmem %s1, %s172
      %p174 = pneg %p61
      %p175 = pneg %p58
      %p176 = scmp.lt.s32.totalorder %s14, 3
      %s177 = scalar_select %p176, %s14, 3
      %s178 = smul.addr %s177, 8
      %s179 = scalar_lea.vmem %s2, %s178
      %p180 = pneg %p87
      %p181 = pneg %p84
      %p182 = pneg %p113
      %p183 = pneg %p110
      %p184 = scmp.lt.s32.totalorder %s14, 3
      %s185 = scalar_select %p184, %s14, 3
      %s186 = smul.addr %s185, 4
      %s187 = smul.addr %s186, 8
      %s188 = scalar_lea.vmem %s3, %s187
      %p189 = scmp.lt.s32.totalorder %s14, 3
      %s190 = scalar_select %p189, %s14, 3
      %s191 = smul.addr %s190, 72
      %s192 = smul.addr %s191, 4
      %s193 = scalar_lea.vmem %s0, %s192
      %p194 = scmp.lt.s32.totalorder %s14, 3
      %s195 = scalar_select %p194, %s14, 3
      %s196 = smul.addr %s195, 2
      %s197 = smul.addr %s196, 4
      %s198 = scalar_lea.vmem %s1, %s197
      %p199 = scmp.lt.s32.totalorder %s14, 3
      %s200 = scalar_select %p199, %s14, 3
      %s201 = smul.addr %s200, 8
      %s202 = scalar_lea.vmem %s2, %s201
      %p203 = scmp.lt.s32.totalorder %s14, 3
      %s204 = scalar_select %p203, %s14, 3
      %s205 = smul.addr %s204, 4
      %s206 = smul.addr %s205, 8
      %s207 = scalar_lea.vmem %s3, %s206
      %v209 = vld [vmem:[%s198] sm:$0xff]
      %v210 = vld [vmem:[%s193] sm:$0xff]
      %v211 = vld [vmem:[%s193 + $0x8] sm:$0xff]
      %v212 = vld [vmem:[%s193 + $0x10] sm:$0xff]
      %v213 = vld [vmem:[%s193 + $0x18] sm:$0xff]
      %v214 = vld [vmem:[%s193 + $0x20] sm:$0xff]
      %v215 = vld [vmem:[%s193 + $0x28] sm:$0xff]
      %v216 = vld [vmem:[%s193 + $0x30] sm:$0xff]
      %v217 = vld [vmem:[%s193 + $0x38] sm:$0xff]
      %v218 = vld [vmem:[%s193 + $0x40] sm:$0xff]
      %v219 = vld [vmem:[%s193 + $0x48] sm:$0xff]
      %v220 = vld [vmem:[%s193 + $0x50] sm:$0xff]
      %v221 = vld [vmem:[%s193 + $0x58] sm:$0xff]
      %v222 = vld [vmem:[%s193 + $0x60] sm:$0xff]
      %v223 = vld [vmem:[%s193 + $0x68] sm:$0xff]
      %v224 = vld [vmem:[%s193 + $0x70] sm:$0xff]
      %v225 = vld [vmem:[%s193 + $0x78] sm:$0xff]
      %v226 = vld [vmem:[%s193 + $0x80] sm:$0xff]
      %v227 = vld [vmem:[%s193 + $0x88] sm:$0xff]
      %v228 = vld [vmem:[%s193 + $0x90] sm:$0xff]
      %v229 = vld [vmem:[%s193 + $0x98] sm:$0xff]
      %v230 = vld [vmem:[%s193 + $0xa0] sm:$0xff]
      %v231 = vld [vmem:[%s193 + $0xa8] sm:$0xff]
      %v232 = vld [vmem:[%s193 + $0xb0] sm:$0xff]
      %v233 = vld [vmem:[%s193 + $0xb8] sm:$0xff]
      %v234 = vld [vmem:[%s193 + $0xc0] sm:$0xff]
      %v235 = vld [vmem:[%s193 + $0xc8] sm:$0xff]
      %v236 = vld [vmem:[%s193 + $0xd0] sm:$0xff]
      %v237 = vld [vmem:[%s193 + $0xd8] sm:$0xff]
      %v238 = vld [vmem:[%s193 + $0xe0] sm:$0xff]
      %v239 = vld [vmem:[%s193 + $0xe8] sm:$0xff]
      %v240 = vld [vmem:[%s193 + $0xf0] sm:$0xff]
      %v241 = vld [vmem:[%s193 + $0xf8] sm:$0xff]
      %v242 = vld [vmem:[%s193 + $0x100] sm:$0xff]
      %v243 = vld [vmem:[%s193 + $0x108] sm:$0xff]
      %v244 = vld [vmem:[%s193 + $0x110] sm:$0xff]
      %v245 = vld [vmem:[%s193 + $0x118] sm:$0xff]
      %v246 = vld [vmem:[%s202] sm:$0xff]
      %248 = vset.pattern.permute.xlu0 0
      %249 = vperm.xlu0 %248, %v246
      %v250 = vpop.permute.xlu0 %249
      %v253 = vunpack.c.l.b16 %v209
      %v254 = vunpack.c.h.b16 %v209
      %v255 = vpack.c.b16 %v253, %v253
      %v256 = vpack.c.b16 %v254, %v254
      %v294 = vunpack.c.l.b16 %v210
      %v295 = vunpack.c.h.b16 %v210
      %v296 = vunpack.c.l.b16 %v211
      %v297 = vunpack.c.h.b16 %v211
      %v298 = vunpack.c.l.b16 %v212
      %v299 = vunpack.c.h.b16 %v212
      %v300 = vunpack.c.l.b16 %v213
      %v301 = vunpack.c.h.b16 %v213
      %v302 = vunpack.c.l.b16 %v214
      %v303 = vunpack.c.h.b16 %v214
      %v304 = vunpack.c.l.b16 %v215
      %v305 = vunpack.c.h.b16 %v215
      %v306 = vunpack.c.l.b16 %v216
      %v307 = vunpack.c.h.b16 %v216
      %v308 = vunpack.c.l.b16 %v217
      %v309 = vunpack.c.h.b16 %v217
      %v310 = vunpack.c.l.b16 %v218
      %v311 = vunpack.c.h.b16 %v218
      %v312 = vunpack.c.l.b16 %v219
      %v313 = vunpack.c.h.b16 %v219
      %v314 = vunpack.c.l.b16 %v220
      %v315 = vunpack.c.h.b16 %v220
      %v316 = vunpack.c.l.b16 %v221
      %v317 = vunpack.c.h.b16 %v221
      %v318 = vunpack.c.l.b16 %v222
      %v319 = vunpack.c.h.b16 %v222
      %v320 = vunpack.c.l.b16 %v223
      %v321 = vunpack.c.h.b16 %v223
      %v322 = vunpack.c.l.b16 %v224
      %v323 = vunpack.c.h.b16 %v224
      %v324 = vunpack.c.l.b16 %v225
      %v325 = vunpack.c.h.b16 %v225
      %v326 = vunpack.c.l.b16 %v226
      %v327 = vunpack.c.h.b16 %v226
      %v328 = vunpack.c.l.b16 %v227
      %v329 = vunpack.c.h.b16 %v227
      %v330 = vunpack.c.l.b16 %v228
      %v331 = vunpack.c.h.b16 %v228
      %v332 = vunpack.c.l.b16 %v229
      %v333 = vunpack.c.h.b16 %v229
      %v334 = vunpack.c.l.b16 %v230
      %v335 = vunpack.c.h.b16 %v230
      %v336 = vunpack.c.l.b16 %v231
      %v337 = vunpack.c.h.b16 %v231
      %v338 = vunpack.c.l.b16 %v232
      %v339 = vunpack.c.h.b16 %v232
      %v340 = vunpack.c.l.b16 %v233
      %v341 = vunpack.c.h.b16 %v233
      %v342 = vunpack.c.l.b16 %v234
      %v343 = vunpack.c.h.b16 %v234
      %v344 = vunpack.c.l.b16 %v235
      %v345 = vunpack.c.h.b16 %v235
      %v346 = vunpack.c.l.b16 %v236
      %v347 = vunpack.c.h.b16 %v236
      %v348 = vunpack.c.l.b16 %v237
      %v349 = vunpack.c.h.b16 %v237
      %v350 = vunpack.c.l.b16 %v238
      %v351 = vunpack.c.h.b16 %v238
      %v352 = vunpack.c.l.b16 %v239
      %v353 = vunpack.c.h.b16 %v239
      %v354 = vunpack.c.l.b16 %v240
      %v355 = vunpack.c.h.b16 %v240
      %v356 = vunpack.c.l.b16 %v241
      %v357 = vunpack.c.h.b16 %v241
      %v358 = vunpack.c.l.b16 %v242
      %v359 = vunpack.c.h.b16 %v242
      %v360 = vunpack.c.l.b16 %v243
      %v361 = vunpack.c.h.b16 %v243
      %v362 = vunpack.c.l.b16 %v244
      %v363 = vunpack.c.h.b16 %v244
      %v364 = vunpack.c.l.b16 %v245
      %v365 = vunpack.c.h.b16 %v245
      %v366 = vpack.c.b16 %v298, %v294
      %v367 = vpack.c.b16 %v299, %v295
      %v368 = vpack.c.b16 %v300, %v296
      %v369 = vpack.c.b16 %v301, %v297
      %v370 = vpack.c.b16 %v306, %v302
      %v371 = vpack.c.b16 %v307, %v303
      %v372 = vpack.c.b16 %v308, %v304
      %v373 = vpack.c.b16 %v309, %v305
      %v374 = vpack.c.b16 %v314, %v310
      %v375 = vpack.c.b16 %v315, %v311
      %v376 = vpack.c.b16 %v316, %v312
      %v377 = vpack.c.b16 %v317, %v313
      %v378 = vpack.c.b16 %v322, %v318
      %v379 = vpack.c.b16 %v323, %v319
      %v380 = vpack.c.b16 %v324, %v320
      %v381 = vpack.c.b16 %v325, %v321
      %v382 = vpack.c.b16 %v330, %v326
      %v383 = vpack.c.b16 %v331, %v327
      %v384 = vpack.c.b16 %v332, %v328
      %v385 = vpack.c.b16 %v333, %v329
      %v386 = vpack.c.b16 %v338, %v334
      %v387 = vpack.c.b16 %v339, %v335
      %v388 = vpack.c.b16 %v340, %v336
      %v389 = vpack.c.b16 %v341, %v337
      %v390 = vpack.c.b16 %v346, %v342
      %v391 = vpack.c.b16 %v347, %v343
      %v392 = vpack.c.b16 %v348, %v344
      %v393 = vpack.c.b16 %v349, %v345
      %v394 = vpack.c.b16 %v354, %v350
      %v395 = vpack.c.b16 %v355, %v351
      %v396 = vpack.c.b16 %v356, %v352
      %v397 = vpack.c.b16 %v357, %v353
      %v398 = vpack.c.b16 %v362, %v358
      %v399 = vpack.c.b16 %v363, %v359
      %v400 = vpack.c.b16 %v364, %v360
      %v401 = vpack.c.b16 %v365, %v361
      %vm438 = vcmask 130048
      %v440 = vsel %vm438, %v256, 0
      %442 = vmatpush.bf16.msra.mxu0 %v394
      %443 = vmatpush.bf16.msra.mxu0 %v390
      %444 = vmatpush.bf16.msra.mxu0 %v386
      %445 = vmatpush.bf16.msra.mxu0 %v382
      %446 = vmatpush.bf16.msra.mxu0 %v378
      %447 = vmatpush.bf16.msra.mxu0 %v374
      %448 = vmatpush.bf16.msra.mxu0 %v370
      %449 = vmatpush.bf16.msra.mxu0 %v366
      %450 = vmatmul.bf16.gmra.mxu0 %v255
      %v451 = vpop.f32.mrf.mxu0
      %v452 = vadd.f32 %v250, %v451
      %v453 = vpop.f32.mrf.mxu0
      %454 = vdwg.mxu0
      %455 = vmatpush.bf16.msra.mxu0 0
      %456 = vmatpush.bf16.msra.mxu0 0
      %457 = vmatpush.bf16.msra.mxu0 0
      %458 = vmatpush.bf16.msra.mxu0 0
      %459 = vmatpush.bf16.msra.mxu0 0
      %460 = vmatpush.bf16.msra.mxu0 0
      %461 = vmatpush.bf16.msra.mxu0 0
      %462 = vmatpush.bf16.msra.mxu0 %v398
      %463 = vmatmul.bf16.gmra.mxu0 %v440
      %v464 = vpop.f32.mrf.mxu0
      %v465 = vadd.f32 %v452, %v464
      %v466 = vpop.f32.mrf.mxu0
      %467 = vdwg.mxu0
      %468 = vmatpush.bf16.msra.mxu0 %v395
      %469 = vmatpush.bf16.msra.mxu0 %v391
      %470 = vmatpush.bf16.msra.mxu0 %v387
      %471 = vmatpush.bf16.msra.mxu0 %v383
      %472 = vmatpush.bf16.msra.mxu0 %v379
      %473 = vmatpush.bf16.msra.mxu0 %v375
      %474 = vmatpush.bf16.msra.mxu0 %v371
      %475 = vmatpush.bf16.msra.mxu0 %v367
      %476 = vmatmul.bf16.gmra.mxu0 %v255
      %v477 = vpop.f32.mrf.mxu0
      %v478 = vadd.f32 %v250, %v477
      %v479 = vpop.f32.mrf.mxu0
      %480 = vdwg.mxu0
      %481 = vmatpush.bf16.msra.mxu0 0
      %482 = vmatpush.bf16.msra.mxu0 0
      %483 = vmatpush.bf16.msra.mxu0 0
      %484 = vmatpush.bf16.msra.mxu0 0
      %485 = vmatpush.bf16.msra.mxu0 0
      %486 = vmatpush.bf16.msra.mxu0 0
      %487 = vmatpush.bf16.msra.mxu0 0
      %488 = vmatpush.bf16.msra.mxu0 %v399
      %489 = vmatmul.bf16.gmra.mxu0 %v440
      %v490 = vpop.f32.mrf.mxu0
      %v491 = vadd.f32 %v478, %v490
      %v492 = vpop.f32.mrf.mxu0
      %493 = vdwg.mxu0
      %494 = vmatpush.bf16.msra.mxu0 %v396
      %495 = vmatpush.bf16.msra.mxu0 %v392
      %496 = vmatpush.bf16.msra.mxu0 %v388
      %497 = vmatpush.bf16.msra.mxu0 %v384
      %498 = vmatpush.bf16.msra.mxu0 %v380
      %499 = vmatpush.bf16.msra.mxu0 %v376
      %500 = vmatpush.bf16.msra.mxu0 %v372
      %501 = vmatpush.bf16.msra.mxu0 %v368
      %502 = vmatmul.bf16.gmra.mxu0 %v255
      %v503 = vpop.f32.mrf.mxu0
      %v504 = vadd.f32 %v250, %v503
      %v505 = vpop.f32.mrf.mxu0
      %506 = vdwg.mxu0
      %507 = vmatpush.bf16.msra.mxu0 0
      %508 = vmatpush.bf16.msra.mxu0 0
      %509 = vmatpush.bf16.msra.mxu0 0
      %510 = vmatpush.bf16.msra.mxu0 0
      %511 = vmatpush.bf16.msra.mxu0 0
      %512 = vmatpush.bf16.msra.mxu0 0
      %513 = vmatpush.bf16.msra.mxu0 0
      %514 = vmatpush.bf16.msra.mxu0 %v400
      %515 = vmatmul.bf16.gmra.mxu0 %v440
      %v516 = vpop.f32.mrf.mxu0
      %v517 = vadd.f32 %v504, %v516
      %v518 = vpop.f32.mrf.mxu0
      %519 = vdwg.mxu0
      %520 = vmatpush.bf16.msra.mxu0 %v397
      %521 = vmatpush.bf16.msra.mxu0 %v393
      %522 = vmatpush.bf16.msra.mxu0 %v389
      %523 = vmatpush.bf16.msra.mxu0 %v385
      %524 = vmatpush.bf16.msra.mxu0 %v381
      %525 = vmatpush.bf16.msra.mxu0 %v377
      %526 = vmatpush.bf16.msra.mxu0 %v373
      %527 = vmatpush.bf16.msra.mxu0 %v369
      %528 = vmatmul.bf16.gmra.mxu0 %v255
      %v529 = vpop.f32.mrf.mxu0
      %v530 = vadd.f32 %v250, %v529
      %v531 = vpop.f32.mrf.mxu0
      %532 = vdwg.mxu0
      %533 = vmatpush.bf16.msra.mxu0 0
      %534 = vmatpush.bf16.msra.mxu0 0
      %535 = vmatpush.bf16.msra.mxu0 0
      %536 = vmatpush.bf16.msra.mxu0 0
      %537 = vmatpush.bf16.msra.mxu0 0
      %538 = vmatpush.bf16.msra.mxu0 0
      %539 = vmatpush.bf16.msra.mxu0 0
      %540 = vmatpush.bf16.msra.mxu0 %v401
      %541 = vmatmul.bf16.gmra.mxu0 %v440
      %v542 = vpop.f32.mrf.mxu0
      %v543 = vadd.f32 %v530, %v542
      %v544 = vpop.f32.mrf.mxu0
      %545 = vdwg.mxu0
      %546 = vst [vmem:[%s207] sm:$0xff] %v465
      %547 = vst [vmem:[%s207 + $0x8] sm:$0xff] %v491
      %548 = vst [vmem:[%s207 + $0x10] sm:$0xff] %v517
      %549 = vst [vmem:[%s207 + $0x18] sm:$0xff] %v543
      %p550 = scmp.lt.s32.totalorder %s14, 3
      %s551 = scalar_select %p550, %s14, 3
      %s552 = smul.addr %s551, 4
      %s553 = smul.addr %s552, 8
      %s554 = scalar_lea.vmem %s3, %s553
      // Predicated region
      $region33: #{prediction_convolutions.1} parent=31 // pred_check
        %p555 = pneg %p110
      $region34: #{prediction_convolutions.1} parent=31 // pred_check_branch
        %557 = sbr.rel (%p555) target = $region36
      $region35: #{prediction_convolutions.1} parent=31 // pred_region
        _
      $region36: #{prediction_convolutions.1} parent=31 // pred_fallthru
        _
    $region32: #{prediction_convolutions.1} parent=5 // pred_fallthru
      _
    %p558 = scmp.le.s32.totalorder 2, %s9
    // Predicated region
    $region37: #{prediction_convolutions.1} parent=5 // pred_check
      %p559 = pneg %p558
    $region38: #{prediction_convolutions.1} parent=5 // pred_check_branch
      %561 = sbr.rel (%p559) target = $region40
    $region39: #{prediction_convolutions.1} parent=5 // pred_region
      %s562 = ssub.s32 %s9, 2
      // Predicated region
      $region41: #{prediction_convolutions.1} parent=39 // pred_check
        %p563 = pneg %p116
      $region42: #{prediction_convolutions.1} parent=39 // pred_check_branch
        %565 = sbr.rel (%p563) target = $region44
      $region43: #{prediction_convolutions.1} parent=39 // pred_region
        %p566 = scmp.lt.s32.totalorder %s15, 3
        %s567 = scalar_select %p566, %s15, 3
        %s568 = smul.addr %s567, 4
        %s569 = smul.addr %s568, 8
        %s570 = scalar_lea.vmem %s3, %s569
      $region44: #{prediction_convolutions.1} parent=39 // pred_fallthru
        _
    $region40: #{prediction_convolutions.1} parent=5 // pred_fallthru
      _
  $region6: #{prediction_convolutions.1} parent=0 // loop_footer
    %s13 = sadd.s32 1, %s9
  $region7: #{prediction_convolutions.1} parent=0 // loop_footer_branch
    %8 = sbr.rel target = $region3
  $region8: #{prediction_convolutions.1} parent=0 // loop_exit
    _

</llo_original>
